<compile_context>
chip_gen: v6e
topology: v6e:2x2x1
jax: 0.10.0
libtpu: 0.0.40
codegen_flags: <defaults>
</compile_context>

<pallas_src>
import numpy as np
import jax
import jax.numpy as jnp
from jax.experimental import pallas as pl
from jax.experimental.pallas import tpu as pltpu

# 4-bit signed LSQ quantization ranges (nbits_w = nbits_a = 4)
QN_W, QP_W = -8, 7
QN_A, QP_A = -8, 7
BN_EPS = 1e-5
LANE = 128


def _fake_quant(x, alpha, qn, qp):
    # LSQ forward: round(clamp(x/alpha, qn, qp)) * alpha
    return jnp.clip(jnp.round(x / alpha), qn, qp) * alpha


def _round_up(x, m):
    return (x + m - 1) // m * m


def _make_kernel(H):
    XROWS = _round_up(H + 2, 8)            # packed input rows: H + 2 halo, sublane-padded
    MID_OFF = 8                            # first act1-code row (keeps the store aligned)
    MROWS = _round_up(MID_OFF + H + 1, 8)  # act1 scratch rows (codes + halo rows)

    def kernel(x_ref, w1_ref, w2_ref, cv_ref, o_ref, mid_ref):
        # x_ref  : (1, XROWS, 128) f32   packed padded input; lane = img*(W*C) + w*C + c
        # w1_ref : (3, 128, 128)   f32   conv1 integer-code lane matrices (one per kh;
        #                                kw taps + W zero-padding folded into the matrix)
        # w2_ref : (3, 128, 128)   bf16  conv2 integer-code lane matrices
        # cv_ref : (8, 128)        f32   folded per-lane constants (no divides in-kernel)
        # o_ref  : (1, H, 128)     bf16  output quantization codes (dequant in wrapper)
        # mid_ref: (MROWS, 128)    f32   act1 integer codes with zero H-halo rows (scratch)
        cv = cv_ref[...]
        s1f, b1f = cv[0:1, :], cv[1:2, :]
        s2f, b2f = cv[2:3, :], cv[3:4, :]
        alpha2, inv_ao = cv[4:5, :], cv[5:6, :]

        # ---- conv1 (integer codes) + BN1(+alpha_w1, /alpha_a1 folded) + ReLU + quant ----
        # Clean accumulating-dot chain (MRB-friendly on v7x).
        acc1 = jnp.dot(x_ref[0, 0:H, :], w1_ref[0],
                       preferred_element_type=jnp.float32)
        acc1 = acc1 + jnp.dot(x_ref[0, 1:1 + H, :], w1_ref[1],
                              preferred_element_type=jnp.float32)
        acc1 = acc1 + jnp.dot(x_ref[0, 2:2 + H, :], w1_ref[2],
                              preferred_element_type=jnp.float32)
        codes1 = jnp.clip(jnp.round(jnp.maximum(acc1 * s1f + b1f, 0.0)), QN_A, QP_A)

        # Store act1 codes at rows [MID_OFF, MID_OFF+H); zero the H-halo rows
        # (MID_OFF-1 and MID_OFF+H).  All three stores are sublane-aligned, and every
        # row conv2 reads is rewritten each grid step (no stale persistent scratch).
        zero8 = jnp.zeros((8, LANE), mid_ref.dtype)
        mid_ref[0:8, :] = zero8
        mid_ref[MROWS - 8:MROWS, :] = zero8
        mid_ref[MID_OFF:MID_OFF + H, :] = codes1

        # ---- conv2 on bf16 integer codes (exact) + BN2 (scales folded) + quant ----
        acc2 = jnp.dot(mid_ref[MID_OFF - 1:MID_OFF - 1 + H, :].astype(jnp.bfloat16),
                       w2_ref[0], preferred_element_type=jnp.float32)
        acc2 = acc2 + jnp.dot(mid_ref[MID_OFF:MID_OFF + H, :].astype(jnp.bfloat16),
                              w2_ref[1], preferred_element_type=jnp.float32)
        acc2 = acc2 + jnp.dot(mid_ref[MID_OFF + 1:MID_OFF + 1 + H, :].astype(jnp.bfloat16),
                              w2_ref[2], preferred_element_type=jnp.float32)
        codes2 = jnp.clip(jnp.round(acc2 * s2f + b2f), QN_A, QP_A)
        a2 = codes2 * alpha2

        # ---- residual add + ReLU + output ActQ (store integer codes) ----
        resid = x_ref[0, 1:1 + H, :]
        y = jnp.maximum(a2 + resid, 0.0)
        o_ref[0, :, :] = jnp.clip(jnp.round(y * inv_ao), QN_A, QP_A).astype(o_ref.dtype)

    return kernel, XROWS, MROWS


def basic_block_q_forward(x_nchw, p):
    """Forward of BasicBlockQ(inplanes=C, planes=C, stride=1, downsample=None)."""
    N, C, H, W = x_nchw.shape
    P = p["w1"].shape[0]
    assert C == P, "identity residual path requires inplanes == planes"
    assert W * C <= LANE, "TODO(synk): lane-tile the packed layout for W*C > 128"

    PACK = LANE // (W * C)            # images packed into the 128-lane axis per grid step
    G = -(-N // PACK)                 # grid steps
    N_pad = G * PACK
    LUSED = PACK * W * C

    # ---- weights as integer LSQ codes (exact); per-out-channel alphas folded into BN ----
    w1c = jnp.clip(jnp.round(p["w1"] / p["w1_alpha"][:, None, None, None]), QN_W, QP_W)
    w2c = jnp.clip(jnp.round(p["w2"] / p["w2_alpha"][:, None, None, None]), QN_W, QP_W)

    # Block-banded (lane_in, lane_out) matrices, one per kh:
    #   lane_in  = img*(W*C) + w_in*C  + ci
    #   lane_out = img*(W*C) + w_out*C + co
    #   entry    = w[co, ci, kh, w_in - w_out + 1]   (zero outside the 3-tap band,
    #              zero across images -> kw taps + W zero padding live in the matrix)
    lane_idx = np.arange(LUSED)
    img, r = np.divmod(lane_idx, W * C)
    wpos, ch = np.divmod(r, C)
    kw = wpos[:, None] - wpos[None, :] + 1                          # w_in - w_out + 1
    valid = (img[:, None] == img[None, :]) & (kw >= 0) & (kw <= 2)
    base = (ch[None, :] * C + ch[:, None]) * 9 + np.clip(kw, 0, 2)  # (co*C + ci)*9 + kw
    idx = np.zeros((3, LANE, LANE), np.int32)
    msk = np.zeros((3, LANE, LANE), np.float32)
    for kh in range(3):
        idx[kh, :LUSED, :LUSED] = base + 3 * kh
        msk[kh, :LUSED, :LUSED] = valid.astype(np.float32)
    idx, msk = jnp.asarray(idx), jnp.asarray(msk)

    def lane_mats(wc, dtype):
        flat = wc.astype(jnp.float32).reshape(-1)
        return (flat[idx] * msk).astype(dtype)

    w1_t = lane_mats(w1c, jnp.float32)     # conv1 stays f32 (x is real-valued f32)
    w2_t = lane_mats(w2c, jnp.bfloat16)    # conv2 operands are exact small ints -> bf16 MXU

    # ---- BN folding + quantization-scale folding (kernel has no divides) ----
    def fold_bn(bn):
        g, b, m, v = bn
        s = g / jnp.sqrt(v + BN_EPS)
        return s, b - m * s

    s1, b1 = fold_bn(p["bn1"])
    s2, b2 = fold_bn(p["bn2"])
    a1, a2, ao = p["act1_alpha"], p["act2_alpha"], p["out_alpha"]

    def lanevec(v_chan):
        t = jnp.tile(v_chan.astype(jnp.float32), PACK * W)          # per-lane channel tile
        return jnp.zeros((LANE,), jnp.float32).at[:LUSED].set(t)

    cvec = jnp.stack([
        lanevec(s1 * p["w1_alpha"] / a1),         # 0: BN1 scale * alpha_w1 / alpha_a1
        lanevec(b1 / a1),                         # 1: BN1 bias / alpha_a1
        lanevec(s2 * p["w2_alpha"] * a1 / a2),    # 2: BN2 scale * alpha_a1*alpha_w2/alpha_a2
        lanevec(b2 / a2),                         # 3: BN2 bias / alpha_a2
        jnp.full((LANE,), a2, jnp.float32),       # 4: alpha_a2 (dequant act2)
        jnp.full((LANE,), 1.0 / ao, jnp.float32), # 5: 1/alpha_out
        jnp.zeros((LANE,), jnp.float32),          # 6: unused
        jnp.zeros((LANE,), jnp.float32),          # 7: unused
    ], axis=0)

    kernel, XROWS, MROWS = _make_kernel(H)

    # ---- layout glue: pack (PACK images x W x C) into lanes, H (+halo rows) into sublanes
    x = x_nchw.astype(jnp.float32)
    if N_pad > N:
        x = jnp.pad(x, ((0, N_pad - N), (0, 0), (0, 0), (0, 0)))
    xp = jnp.transpose(x, (0, 2, 3, 1)).reshape(G, PACK, H, W * C)   # (g, p, h, w*c)
    xp = jnp.transpose(xp, (0, 2, 1, 3)).reshape(G, H, LUSED)        # lane = p*W*C + w*C + c
    if LUSED < LANE:
        xp = jnp.pad(xp, ((0, 0), (0, 0), (0, LANE - LUSED)))
    xp = jnp.pad(xp, ((0, 0), (1, XROWS - H - 1), (0, 0)))           # zero H-halo rows

    # TODO(synk): for large H/W add an H-strip grid axis (2-row halo) to bound VMEM on
    # v7x (64 MiB) and keep both TensorCores busy; at this size one packed step is <1 MiB.
    out_codes = pl.pallas_call(
        kernel,
        out_shape=jax.ShapeDtypeStruct((G, H, LANE), jnp.bfloat16),
        grid_spec=pltpu.PrefetchScalarGridSpec(
            num_scalar_prefetch=0,
            grid=(G,),
            in_specs=[
                pl.BlockSpec((1, XROWS, LANE), lambda g: (g, 0, 0)),   # packed input
                pl.BlockSpec((3, LANE, LANE), lambda g: (0, 0, 0)),    # conv1 lane matrices
                pl.BlockSpec((3, LANE, LANE), lambda g: (0, 0, 0)),    # conv2 lane matrices
                pl.BlockSpec((8, LANE), lambda g: (0, 0)),             # folded constants
            ],
            out_specs=pl.BlockSpec((1, H, LANE), lambda g: (g, 0, 0)),
            scratch_shapes=[pltpu.VMEM((MROWS, LANE), jnp.float32)],
        ),
        compiler_params=pltpu.CompilerParams(dimension_semantics=("parallel",)),
    )(xp, w1_t, w2_t, cvec)

    # dequantize + unpack lanes back to NCHW; drop batch padding
    out = out_codes.astype(jnp.float32) * ao
    out = out[:, :, :LUSED].reshape(G, H, PACK, W, C)
    out = jnp.transpose(out, (0, 2, 4, 1, 3)).reshape(N_pad, C, H, W)
    return out[:N]


def _ref_forward(x_nchw, p):
    """Pure-JAX reference mirroring the original module (folded-BN inference form)."""
    w1q = _fake_quant(p["w1"], p["w1_alpha"][:, None, None, None], QN_W, QP_W)
    w2q = _fake_quant(p["w2"], p["w2_alpha"][:, None, None, None], QN_W, QP_W)

    def conv(x, w):
        return jax.lax.conv_general_dilated(
            x, w, window_strides=(1, 1), padding=((1, 1), (1, 1)),
            dimension_numbers=("NCHW", "OIHW", "NCHW"))

    def bn(x, params):
        g, b, m, v = params
        s = g / jnp.sqrt(v + BN_EPS)
        bias = b - m * s
        return x * s[None, :, None, None] + bias[None, :, None, None]

    out = conv(x_nchw, w1q)
    out = jnp.maximum(bn(out, p["bn1"]), 0.0)
    out = _fake_quant(out, p["act1_alpha"], QN_A, QP_A)
    out = conv(out, w2q)
    out = bn(out, p["bn2"])
    out = _fake_quant(out, p["act2_alpha"], QN_A, QP_A)
    out = jnp.maximum(out + x_nchw, 0.0)
    out = _fake_quant(out, p["out_alpha"], QN_A, QP_A)
    return out


def make_params(key, inplanes, planes):
    ks = jax.random.split(key, 4)
    w1 = 0.1 * jax.random.normal(ks[0], (planes, inplanes, 3, 3), jnp.float32)
    w2 = 0.1 * jax.random.normal(ks[1], (planes, planes, 3, 3), jnp.float32)
    # kernel-wise (per output channel) LSQ step sizes
    w1_alpha = 2.0 * jnp.mean(jnp.abs(w1), axis=(1, 2, 3)) / jnp.sqrt(float(QP_W))
    w2_alpha = 2.0 * jnp.mean(jnp.abs(w2), axis=(1, 2, 3)) / jnp.sqrt(float(QP_W))

    def bn_params(k):
        k1, k2, k3, k4 = jax.random.split(k, 4)
        gamma = 1.0 + 0.2 * jax.random.normal(k1, (planes,), jnp.float32)
        beta = 0.1 * jax.random.normal(k2, (planes,), jnp.float32)
        mean = 0.1 * jax.random.normal(k3, (planes,), jnp.float32)
        var = 0.5 + jax.random.uniform(k4, (planes,), jnp.float32)
        return (gamma, beta, mean, var)

    return dict(
        w1=w1, w1_alpha=w1_alpha, bn1=bn_params(ks[2]),
        w2=w2, w2_alpha=w2_alpha, bn2=bn_params(ks[3]),
        act1_alpha=jnp.float32(0.2),
        act2_alpha=jnp.float32(0.25),
        out_alpha=jnp.float32(0.3),
    )


if __name__ == "__main__":
    key = jax.random.PRNGKey(0)
    kx, kp = jax.random.split(key)

    # BasicBlockQ(inplanes=4, planes=4, stride=1, downsample=None)
    N, C, H, W = 2, 4, 16, 16
    x = jax.random.normal(kx, (N, C, H, W), jnp.float32)
    params = make_params(kp, inplanes=C, planes=C)

    fwd = jax.jit(lambda xx: basic_block_q_forward(xx, params))
    out = fwd(x)
    jax.block_until_ready(out)

    ref = _ref_forward(x, params)
    assert out.shape == ref.shape == (N, C, H, W)
    diff = jnp.abs(out - ref)
    # The kernel folds quantization scales and accumulates the convs in a different (but
    # exact-on-integer-codes) order than lax.conv; only values sitting essentially on a
    # round-half boundary can flip by one quantization step.
    mismatch_frac = float(jnp.mean((diff > 1e-3).astype(jnp.float32)))
    max_diff = float(jnp.max(diff))
    assert max_diff < 0.75 and mismatch_frac < 0.02, (
        f"max abs diff = {max_diff}, mismatch fraction = {mismatch_frac}")
    print("KERNEL_OK")
</pallas_src>

<mosaic_0001>
module attributes {stable_mosaic.version = 11 : i64} {
  func.func @kernel(%arg0: i32, %arg1: memref<1x24x128xf32, #tpu.memory_space<vmem>>, %arg2: memref<3x128x128xf32, #tpu.memory_space<vmem>>, %arg3: memref<3x128x128xbf16, #tpu.memory_space<vmem>>, %arg4: memref<8x128xf32, #tpu.memory_space<vmem>>, %arg5: memref<1x16x128xbf16, #tpu.memory_space<vmem>>, %arg6: memref<32x128xf32, #tpu.memory_space<vmem>>) attributes {dimension_semantics = [#tpu.dimension_semantics<parallel>], iteration_bounds = array<i64: 1>, scalar_prefetch = 0 : i64, scratch_operands = 1 : i64, tpu.core_type = #tpu.core_type<tc>, window_params = [{transform_indices = @transform_0, window_bounds = array<i64: 1, 24, 128>}, {pipeline_mode = #tpu.pipeline_mode<synchronous>, transform_indices = @transform_1, window_bounds = array<i64: 3, 128, 128>}, {pipeline_mode = #tpu.pipeline_mode<synchronous>, transform_indices = @transform_2, window_bounds = array<i64: 3, 128, 128>}, {pipeline_mode = #tpu.pipeline_mode<synchronous>, transform_indices = @transform_3, window_bounds = array<i64: 8, 128>}, {transform_indices = @transform_4, window_bounds = array<i64: 1, 16, 128>}]} {
    %c0 = arith.constant 0 : index
    %c0_0 = arith.constant 0 : index
    %0 = vector.load %arg4[%c0, %c0_0] : memref<8x128xf32, #tpu.memory_space<vmem>>, vector<8x128xf32>
    %1 = vector.extract_strided_slice %0 {offsets = [0, 0], sizes = [1, 128], strides = [1, 1]} : vector<8x128xf32> to vector<1x128xf32>
    %2 = vector.extract_strided_slice %0 {offsets = [1, 0], sizes = [1, 128], strides = [1, 1]} : vector<8x128xf32> to vector<1x128xf32>
    %3 = vector.extract_strided_slice %0 {offsets = [2, 0], sizes = [1, 128], strides = [1, 1]} : vector<8x128xf32> to vector<1x128xf32>
    %4 = vector.extract_strided_slice %0 {offsets = [3, 0], sizes = [1, 128], strides = [1, 1]} : vector<8x128xf32> to vector<1x128xf32>
    %5 = vector.extract_strided_slice %0 {offsets = [4, 0], sizes = [1, 128], strides = [1, 1]} : vector<8x128xf32> to vector<1x128xf32>
    %6 = vector.extract_strided_slice %0 {offsets = [5, 0], sizes = [1, 128], strides = [1, 1]} : vector<8x128xf32> to vector<1x128xf32>
    %c0_1 = arith.constant 0 : index
    %c0_2 = arith.constant 0 : index
    %c0_3 = arith.constant 0 : index
    %7 = vector.load %arg1[%c0_1, %c0_2, %c0_3] : memref<1x24x128xf32, #tpu.memory_space<vmem>>, vector<1x16x128xf32>
    %8 = vector.shape_cast %7 : vector<1x16x128xf32> to vector<16x128xf32>
    %c0_4 = arith.constant 0 : index
    %c0_5 = arith.constant 0 : index
    %c0_6 = arith.constant 0 : index
    %9 = vector.load %arg2[%c0_4, %c0_5, %c0_6] : memref<3x128x128xf32, #tpu.memory_space<vmem>>, vector<1x128x128xf32>
    %10 = vector.shape_cast %9 : vector<1x128x128xf32> to vector<128x128xf32>
    %cst = arith.constant dense<0.000000e+00> : vector<16x128xf32>
    %11 = tpu.matmul %8, %10, %cst {dimension_numbers = #tpu.dot_dimension_numbers<[1], [0], [0], [1], [0, 0, 1, 1], [], []>} : vector<16x128xf32>, vector<128x128xf32>, vector<16x128xf32> -> vector<16x128xf32>
    %c0_7 = arith.constant 0 : index
    %c1 = arith.constant 1 : index
    %c0_8 = arith.constant 0 : index
    %12 = vector.load %arg1[%c0_7, %c1, %c0_8] : memref<1x24x128xf32, #tpu.memory_space<vmem>>, vector<1x16x128xf32>
    %13 = vector.shape_cast %12 : vector<1x16x128xf32> to vector<16x128xf32>
    %c1_9 = arith.constant 1 : index
    %c0_10 = arith.constant 0 : index
    %c0_11 = arith.constant 0 : index
    %14 = vector.load %arg2[%c1_9, %c0_10, %c0_11] : memref<3x128x128xf32, #tpu.memory_space<vmem>>, vector<1x128x128xf32>
    %15 = vector.shape_cast %14 : vector<1x128x128xf32> to vector<128x128xf32>
    %cst_12 = arith.constant dense<0.000000e+00> : vector<16x128xf32>
    %16 = tpu.matmul %13, %15, %cst_12 {dimension_numbers = #tpu.dot_dimension_numbers<[1], [0], [0], [1], [0, 0, 1, 1], [], []>} : vector<16x128xf32>, vector<128x128xf32>, vector<16x128xf32> -> vector<16x128xf32>
    %17 = arith.addf %11, %16 : vector<16x128xf32>
    %c0_13 = arith.constant 0 : index
    %c2 = arith.constant 2 : index
    %c0_14 = arith.constant 0 : index
    %18 = vector.load %arg1[%c0_13, %c2, %c0_14] : memref<1x24x128xf32, #tpu.memory_space<vmem>>, vector<1x16x128xf32>
    %19 = vector.shape_cast %18 : vector<1x16x128xf32> to vector<16x128xf32>
    %c2_15 = arith.constant 2 : index
    %c0_16 = arith.constant 0 : index
    %c0_17 = arith.constant 0 : index
    %20 = vector.load %arg2[%c2_15, %c0_16, %c0_17] : memref<3x128x128xf32, #tpu.memory_space<vmem>>, vector<1x128x128xf32>
    %21 = vector.shape_cast %20 : vector<1x128x128xf32> to vector<128x128xf32>
    %cst_18 = arith.constant dense<0.000000e+00> : vector<16x128xf32>
    %22 = tpu.matmul %19, %21, %cst_18 {dimension_numbers = #tpu.dot_dimension_numbers<[1], [0], [0], [1], [0, 0, 1, 1], [], []>} : vector<16x128xf32>, vector<128x128xf32>, vector<16x128xf32> -> vector<16x128xf32>
    %23 = arith.addf %17, %22 : vector<16x128xf32>
    %24 = vector.broadcast %1 : vector<1x128xf32> to vector<16x128xf32>
    %25 = arith.mulf %23, %24 : vector<16x128xf32>
    %26 = vector.broadcast %2 : vector<1x128xf32> to vector<16x128xf32>
    %27 = arith.addf %25, %26 : vector<16x128xf32>
    %cst_19 = arith.constant 0.000000e+00 : f32
    %28 = vector.broadcast %cst_19 : f32 to vector<16x128xf32>
    %29 = arith.maximumf %27, %28 : vector<16x128xf32>
    %30 = math.roundeven %29 : vector<16x128xf32>
    %c-8_i32 = arith.constant -8 : i32
    %c7_i32 = arith.constant 7 : i32
    %31 = arith.sitofp %c-8_i32 : i32 to f32
    %32 = vector.broadcast %31 : f32 to vector<16x128xf32>
    %33 = arith.maximumf %32, %30 : vector<16x128xf32>
    %34 = arith.sitofp %c7_i32 : i32 to f32
    %35 = vector.broadcast %34 : f32 to vector<16x128xf32>
    %36 = arith.minimumf %35, %33 : vector<16x128xf32>
    %cst_20 = arith.constant 0.000000e+00 : f32
    %37 = vector.broadcast %cst_20 : f32 to vector<8x128xf32>
    %c0_21 = arith.constant 0 : index
    %c0_22 = arith.constant 0 : index
    %38 = vector.load %arg6[%c0_21, %c0_22] : memref<32x128xf32, #tpu.memory_space<vmem>>, vector<8x128xf32>
    tpu.vector_store %arg6[%c0_21, %c0_22], %37 {strides = array<i32>} : memref<32x128xf32, #tpu.memory_space<vmem>>, vector<8x128xf32>,
    %c24 = arith.constant 24 : index
    %c0_23 = arith.constant 0 : index
    %39 = vector.load %arg6[%c24, %c0_23] : memref<32x128xf32, #tpu.memory_space<vmem>>, vector<8x128xf32>
    tpu.vector_store %arg6[%c24, %c0_23], %37 {strides = array<i32>} : memref<32x128xf32, #tpu.memory_space<vmem>>, vector<8x128xf32>,
    %c8 = arith.constant 8 : index
    %c0_24 = arith.constant 0 : index
    %40 = vector.load %arg6[%c8, %c0_24] : memref<32x128xf32, #tpu.memory_space<vmem>>, vector<16x128xf32>
    tpu.vector_store %arg6[%c8, %c0_24], %36 {strides = array<i32>} : memref<32x128xf32, #tpu.memory_space<vmem>>, vector<16x128xf32>,
    %c7 = arith.constant 7 : index
    %c0_25 = arith.constant 0 : index
    %41 = vector.load %arg6[%c7, %c0_25] : memref<32x128xf32, #tpu.memory_space<vmem>>, vector<16x128xf32>
    %42 = arith.truncf %41 : vector<16x128xf32> to vector<16x128xbf16>
    %c0_26 = arith.constant 0 : index
    %c0_27 = arith.constant 0 : index
    %c0_28 = arith.constant 0 : index
    %43 = vector.load %arg3[%c0_26, %c0_27, %c0_28] : memref<3x128x128xbf16, #tpu.memory_space<vmem>>, vector<1x128x128xbf16>
    %44 = vector.shape_cast %43 : vector<1x128x128xbf16> to vector<128x128xbf16>
    %cst_29 = arith.constant dense<0.000000e+00> : vector<16x128xf32>
    %45 = tpu.matmul %42, %44, %cst_29 {dimension_numbers = #tpu.dot_dimension_numbers<[1], [0], [0], [1], [0, 0, 1, 1], [], []>} : vector<16x128xbf16>, vector<128x128xbf16>, vector<16x128xf32> -> vector<16x128xf32>
    %c8_30 = arith.constant 8 : index
    %c0_31 = arith.constant 0 : index
    %46 = vector.load %arg6[%c8_30, %c0_31] : memref<32x128xf32, #tpu.memory_space<vmem>>, vector<16x128xf32>
    %47 = arith.truncf %46 : vector<16x128xf32> to vector<16x128xbf16>
    %c1_32 = arith.constant 1 : index
    %c0_33 = arith.constant 0 : index
    %c0_34 = arith.constant 0 : index
    %48 = vector.load %arg3[%c1_32, %c0_33, %c0_34] : memref<3x128x128xbf16, #tpu.memory_space<vmem>>, vector<1x128x128xbf16>
    %49 = vector.shape_cast %48 : vector<1x128x128xbf16> to vector<128x128xbf16>
    %cst_35 = arith.constant dense<0.000000e+00> : vector<16x128xf32>
    %50 = tpu.matmul %47, %49, %cst_35 {dimension_numbers = #tpu.dot_dimension_numbers<[1], [0], [0], [1], [0, 0, 1, 1], [], []>} : vector<16x128xbf16>, vector<128x128xbf16>, vector<16x128xf32> -> vector<16x128xf32>
    %51 = arith.addf %45, %50 : vector<16x128xf32>
    %c9 = arith.constant 9 : index
    %c0_36 = arith.constant 0 : index
    %52 = vector.load %arg6[%c9, %c0_36] : memref<32x128xf32, #tpu.memory_space<vmem>>, vector<16x128xf32>
    %53 = arith.truncf %52 : vector<16x128xf32> to vector<16x128xbf16>
    %c2_37 = arith.constant 2 : index
    %c0_38 = arith.constant 0 : index
    %c0_39 = arith.constant 0 : index
    %54 = vector.load %arg3[%c2_37, %c0_38, %c0_39] : memref<3x128x128xbf16, #tpu.memory_space<vmem>>, vector<1x128x128xbf16>
    %55 = vector.shape_cast %54 : vector<1x128x128xbf16> to vector<128x128xbf16>
    %cst_40 = arith.constant dense<0.000000e+00> : vector<16x128xf32>
    %56 = tpu.matmul %53, %55, %cst_40 {dimension_numbers = #tpu.dot_dimension_numbers<[1], [0], [0], [1], [0, 0, 1, 1], [], []>} : vector<16x128xbf16>, vector<128x128xbf16>, vector<16x128xf32> -> vector<16x128xf32>
    %57 = arith.addf %51, %56 : vector<16x128xf32>
    %58 = vector.broadcast %3 : vector<1x128xf32> to vector<16x128xf32>
    %59 = arith.mulf %57, %58 : vector<16x128xf32>
    %60 = vector.broadcast %4 : vector<1x128xf32> to vector<16x128xf32>
    %61 = arith.addf %59, %60 : vector<16x128xf32>
    %62 = math.roundeven %61 : vector<16x128xf32>
    %c-8_i32_41 = arith.constant -8 : i32
    %c7_i32_42 = arith.constant 7 : i32
    %63 = arith.sitofp %c-8_i32_41 : i32 to f32
    %64 = vector.broadcast %63 : f32 to vector<16x128xf32>
    %65 = arith.maximumf %64, %62 : vector<16x128xf32>
    %66 = arith.sitofp %c7_i32_42 : i32 to f32
    %67 = vector.broadcast %66 : f32 to vector<16x128xf32>
    %68 = arith.minimumf %67, %65 : vector<16x128xf32>
    %69 = vector.broadcast %5 : vector<1x128xf32> to vector<16x128xf32>
    %70 = arith.mulf %68, %69 : vector<16x128xf32>
    %c0_43 = arith.constant 0 : index
    %c1_44 = arith.constant 1 : index
    %c0_45 = arith.constant 0 : index
    %71 = vector.load %arg1[%c0_43, %c1_44, %c0_45] : memref<1x24x128xf32, #tpu.memory_space<vmem>>, vector<1x16x128xf32>
    %72 = vector.shape_cast %71 : vector<1x16x128xf32> to vector<16x128xf32>
    %73 = arith.addf %70, %72 : vector<16x128xf32>
    %cst_46 = arith.constant 0.000000e+00 : f32
    %74 = vector.broadcast %cst_46 : f32 to vector<16x128xf32>
    %75 = arith.maximumf %73, %74 : vector<16x128xf32>
    %76 = vector.broadcast %6 : vector<1x128xf32> to vector<16x128xf32>
    %77 = arith.mulf %75, %76 : vector<16x128xf32>
    %78 = math.roundeven %77 : vector<16x128xf32>
    %c-8_i32_47 = arith.constant -8 : i32
    %c7_i32_48 = arith.constant 7 : i32
    %79 = arith.sitofp %c-8_i32_47 : i32 to f32
    %80 = vector.broadcast %79 : f32 to vector<16x128xf32>
    %81 = arith.maximumf %80, %78 : vector<16x128xf32>
    %82 = arith.sitofp %c7_i32_48 : i32 to f32
    %83 = vector.broadcast %82 : f32 to vector<16x128xf32>
    %84 = arith.minimumf %83, %81 : vector<16x128xf32>
    %85 = arith.truncf %84 : vector<16x128xf32> to vector<16x128xbf16>
    %c0_49 = arith.constant 0 : index
    %c0_50 = arith.constant 0 : index
    %c0_51 = arith.constant 0 : index
    %86 = vector.load %arg5[%c0_49, %c0_50, %c0_51] : memref<1x16x128xbf16, #tpu.memory_space<vmem>>, vector<1x16x128xbf16>
    %87 = vector.shape_cast %86 : vector<1x16x128xbf16> to vector<16x128xbf16>
    %88 = vector.shape_cast %85 : vector<16x128xbf16> to vector<1x16x128xbf16>
    tpu.vector_store %arg5[%c0_49, %c0_50, %c0_51], %88 {strides = array<i32>} : memref<1x16x128xbf16, #tpu.memory_space<vmem>>, vector<1x16x128xbf16>,
    return
  }
  func.func @transform_0(%arg0: i32) -> (i32, i32, i32) {
    %c0_i32 = arith.constant 0 : i32
    %c0_i32_0 = arith.constant 0 : i32
    %c0_i32_1 = arith.constant 0 : i32
    return %arg0, %c0_i32, %c0_i32_0 : i32, i32, i32
  }
  func.func @transform_1(%arg0: i32) -> (i32, i32, i32) {
    %c0_i32 = arith.constant 0 : i32
    %c0_i32_0 = arith.constant 0 : i32
    %c0_i32_1 = arith.constant 0 : i32
    %c0_i32_2 = arith.constant 0 : i32
    return %c0_i32, %c0_i32_0, %c0_i32_1 : i32, i32, i32
  }
  func.func @transform_2(%arg0: i32) -> (i32, i32, i32) {
    %c0_i32 = arith.constant 0 : i32
    %c0_i32_0 = arith.constant 0 : i32
    %c0_i32_1 = arith.constant 0 : i32
    %c0_i32_2 = arith.constant 0 : i32
    return %c0_i32, %c0_i32_0, %c0_i32_1 : i32, i32, i32
  }
  func.func @transform_3(%arg0: i32) -> (i32, i32) {
    %c0_i32 = arith.constant 0 : i32
    %c0_i32_0 = arith.constant 0 : i32
    %c0_i32_1 = arith.constant 0 : i32
    return %c0_i32, %c0_i32_0 : i32, i32
  }
  func.func @transform_4(%arg0: i32) -> (i32, i32, i32) {
    %c0_i32 = arith.constant 0 : i32
    %c0_i32_0 = arith.constant 0 : i32
    %c0_i32_1 = arith.constant 0 : i32
    return %arg0, %c0_i32, %c0_i32_0 : i32, i32, i32
  }
}

</mosaic_0001>

<llo_original>
// kernel: tile.18
$region0: #{tile.18}
  #allocation0 [shape = 's32[1]{0}', space=sflag, size = 0x4, scoped, tag = 'scoped memory for tile.18']
  %s0 = inlined_call_operand.vmem [shape: f32[4], index: 0, kind: input, shape index: {}]
  %s1 = inlined_call_operand.vmem [shape: f32[32,4], index: 1, kind: output, shape index: {}]
  // Predicated region
  $region2: #{tile.18} parent=0 // pred_check
    _
  $region3: #{tile.18} parent=0 // pred_check_branch
    %3 = sbr.rel (0) target = $region5
  $region4: #{tile.18} parent=0 // pred_region
    _
  $region5: #{tile.18} parent=0 // pred_fallthru
    _
  %v4 = vld [vmem:[%s0] ss:$0 sm:$0xff]
  %5 = vst [vmem:[%s1] sm:$0xff] %v4
  %s6 = scalar_lea.vmem %s1, 8
  %7 = vst [vmem:[%s6] sm:$0xff] %v4
  %s8 = scalar_lea.vmem %s1, 16
  %9 = vst [vmem:[%s8] sm:$0xff] %v4
  %s10 = scalar_lea.vmem %s1, 24
  %11 = vst [vmem:[%s10] sm:$0xff] %v4

// kernel: _lambda_.1
$region0: #{_lambda_.1}
  #allocation0 [shape = 'u32[]', space=smem, size = 0x4, offset = 0x4, fixed_abs, tag = 'smem constant byte address 0x4 - core index']
  #allocation1 [shape = 'u32[144,128]{1,0:T(1,128)}', space=vmem, size = 0x12000, scoped, tag = 'internal scratch']
  #allocation2 [shape = 'f32[32,128]{1,0:T(8,128)}', space=vmem, size = 0x4000, scoped, tag = 'scratch operand']
  %s0 = inlined_call_operand.vmem [shape: f32[1,24,128], index: 0, kind: input, shape index: {}]
  %s1 = inlined_call_operand.vmem [shape: f32[3,128,128], index: 1, kind: input, shape index: {}]
  %s2 = inlined_call_operand.vmem [shape: bf16[3,128,128], index: 2, kind: input, shape index: {}]
  %s3 = inlined_call_operand.vmem [shape: f32[8,128], index: 3, kind: input, shape index: {}]
  %s4 = inlined_call_operand.vmem [shape: bf16[1,16,128], index: 4, kind: output, shape index: {}]
  %s5 = sld [smem:[#allocation0]]
  $region26: #{_lambda_.1} parent=0
    _
  %s7 = ssub.s32 1, %s5
  %s8 = scalar_select 0, %s7, %s5
  // Predicated region
  $region2: #{_lambda_.1} parent=0 // pred_check
    _
  $region3: #{_lambda_.1} parent=0 // pred_check_branch
    %10 = sbr.rel (0) target = $region5
  $region4: #{_lambda_.1} parent=0 // pred_region
    _
  $region5: #{_lambda_.1} parent=0 // pred_fallthru
    _
  // Predicated region
  $region6: #{_lambda_.1} parent=0 // pred_check
    _
  $region7: #{_lambda_.1} parent=0 // pred_check_branch
    %12 = sbr.rel (0) target = $region9
  $region8: #{_lambda_.1} parent=0 // pred_region
    _
  $region9: #{_lambda_.1} parent=0 // pred_fallthru
    _
  // Predicated region
  $region10: #{_lambda_.1} parent=0 // pred_check
    _
  $region11: #{_lambda_.1} parent=0 // pred_check_branch
    %14 = sbr.rel (0) target = $region13
  $region12: #{_lambda_.1} parent=0 // pred_region
    _
  $region13: #{_lambda_.1} parent=0 // pred_fallthru
    _
  // Predicated region
  $region14: #{_lambda_.1} parent=0 // pred_check
    _
  $region15: #{_lambda_.1} parent=0 // pred_check_branch
    %16 = sbr.rel (0) target = $region17
  $region16: #{_lambda_.1} parent=0 // pred_region
    _
  $region17: #{_lambda_.1} parent=0 // pred_fallthru
    _
  %v18 = vld [vmem:[%s3] sm:$0xff]
  %v19 = vld [vmem:[%s0] sm:$0xff]
  %v20 = vld [vmem:[%s0 + $0x8] sm:$0xff]
  %v21 = vld [vmem:[%s1] sm:$0xff]
  %v22 = vld [vmem:[%s1 + $0x8] sm:$0xff]
  %v23 = vld [vmem:[%s1 + $0x10] sm:$0xff]
  %v24 = vld [vmem:[%s1 + $0x18] sm:$0xff]
  %v25 = vld [vmem:[%s1 + $0x20] sm:$0xff]
  %v26 = vld [vmem:[%s1 + $0x28] sm:$0xff]
  %v27 = vld [vmem:[%s1 + $0x30] sm:$0xff]
  %v28 = vld [vmem:[%s1 + $0x38] sm:$0xff]
  %v29 = vld [vmem:[%s1 + $0x40] sm:$0xff]
  %v30 = vld [vmem:[%s1 + $0x48] sm:$0xff]
  %v31 = vld [vmem:[%s1 + $0x50] sm:$0xff]
  %v32 = vld [vmem:[%s1 + $0x58] sm:$0xff]
  %v33 = vld [vmem:[%s1 + $0x60] sm:$0xff]
  %v34 = vld [vmem:[%s1 + $0x68] sm:$0xff]
  %v35 = vld [vmem:[%s1 + $0x70] sm:$0xff]
  %v36 = vld [vmem:[%s1 + $0x78] sm:$0xff]
  %v37 = vld [vmem:[%s0 + $0x1] sm:$0xff]
  %v38 = vld [vmem:[%s0 + $0x9] sm:$0xff]
  %s39 = scalar_lea.vmem %s1, 128
  %v40 = vld [vmem:[%s39] sm:$0xff]
  %v41 = vld [vmem:[%s39 + $0x8] sm:$0xff]
  %v42 = vld [vmem:[%s39 + $0x10] sm:$0xff]
  %v43 = vld [vmem:[%s39 + $0x18] sm:$0xff]
  %v44 = vld [vmem:[%s39 + $0x20] sm:$0xff]
  %v45 = vld [vmem:[%s39 + $0x28] sm:$0xff]
  %v46 = vld [vmem:[%s39 + $0x30] sm:$0xff]
  %v47 = vld [vmem:[%s39 + $0x38] sm:$0xff]
  %v48 = vld [vmem:[%s39 + $0x40] sm:$0xff]
  %v49 = vld [vmem:[%s39 + $0x48] sm:$0xff]
  %v50 = vld [vmem:[%s39 + $0x50] sm:$0xff]
  %v51 = vld [vmem:[%s39 + $0x58] sm:$0xff]
  %v52 = vld [vmem:[%s39 + $0x60] sm:$0xff]
  %v53 = vld [vmem:[%s39 + $0x68] sm:$0xff]
  %v54 = vld [vmem:[%s39 + $0x70] sm:$0xff]
  %v55 = vld [vmem:[%s39 + $0x78] sm:$0xff]
  %56 = vmatprep.subr.mxu0 0.0
  %57 = vmatpush1.msra.mxu0 %v55
  %58 = vmatprep.subr.mxu0 0.0
  %59 = vmatpush1.msra.mxu0 %v54
  %60 = vmatprep.subr.mxu0 0.0
  %61 = vmatpush1.msra.mxu0 %v53
  %62 = vmatprep.subr.mxu0 0.0
  %63 = vmatpush1.msra.mxu0 %v52
  %64 = vmatprep.subr.mxu0 0.0
  %65 = vmatpush1.msra.mxu0 %v51
  %66 = vmatprep.subr.mxu0 0.0
  %67 = vmatpush1.msra.mxu0 %v50
  %68 = vmatprep.subr.mxu0 0.0
  %69 = vmatpush1.msra.mxu0 %v49
  %70 = vmatprep.subr.mxu0 0.0
  %71 = vmatpush1.msra.mxu0 %v48
  %72 = vmatprep.subr.mxu0 0.0
  %73 = vmatpush1.msra.mxu0 %v47
  %74 = vmatprep.subr.mxu0 0.0
  %75 = vmatpush1.msra.mxu0 %v46
  %76 = vmatprep.subr.mxu0 0.0
  %77 = vmatpush1.msra.mxu0 %v45
  %78 = vmatprep.subr.mxu0 0.0
  %79 = vmatpush1.msra.mxu0 %v44
  %80 = vmatprep.subr.mxu0 0.0
  %81 = vmatpush1.msra.mxu0 %v43
  %82 = vmatprep.subr.mxu0 0.0
  %83 = vmatpush1.msra.mxu0 %v42
  %84 = vmatprep.subr.mxu0 0.0
  %85 = vmatpush1.msra.mxu0 %v41
  %86 = vmatprep.subr.mxu0 0.0
  %87 = vmatpush1.msra.mxu0 %v40
  %88 = vmatprep.subr.mxu0 0.0
  %89 = vmatpush2.msra.mxu0 0.0
  %90 = vmatprep.subr.mxu0 0.0
  %91 = vmatpush2.msra.mxu0 0.0
  %92 = vmatprep.subr.mxu0 0.0
  %93 = vmatpush2.msra.mxu0 0.0
  %94 = vmatprep.subr.mxu0 0.0
  %95 = vmatpush2.msra.mxu0 0.0
  %96 = vmatprep.subr.mxu0 0.0
  %97 = vmatpush2.msra.mxu0 0.0
  %98 = vmatprep.subr.mxu0 0.0
  %99 = vmatpush2.msra.mxu0 0.0
  %100 = vmatprep.subr.mxu0 0.0
  %101 = vmatpush2.msra.mxu0 0.0
  %102 = vmatprep.subr.mxu0 0.0
  %103 = vmatpush2.msra.mxu0 0.0
  %104 = vmatprep.subr.mxu0 0.0
  %105 = vmatpush2.msra.mxu0 0.0
  %106 = vmatprep.subr.mxu0 0.0
  %107 = vmatpush2.msra.mxu0 0.0
  %108 = vmatprep.subr.mxu0 0.0
  %109 = vmatpush2.msra.mxu0 0.0
  %110 = vmatprep.subr.mxu0 0.0
  %111 = vmatpush2.msra.mxu0 0.0
  %112 = vmatprep.subr.mxu0 0.0
  %113 = vmatpush2.msra.mxu0 0.0
  %114 = vmatprep.subr.mxu0 0.0
  %115 = vmatpush2.msra.mxu0 0.0
  %116 = vmatprep.subr.mxu0 0.0
  %117 = vmatpush2.msra.mxu0 0.0
  %118 = vmatprep.subr.mxu0 0.0
  %119 = vmatpush2.msra.mxu0 0.0
  %120 = vmatprep.mubr.f32.mxu0 0.0
  %121 = vmatmul.mubr.f32.gmra.mxu0 %v37
  %v122 = vpop.f32.mrf.mxu0
  %v123 = vadd.f32 0.0, %v122
  %v124 = vpop.f32.mrf.mxu0
  %125 = vmatprep.mubr.f32.mxu0 0.0
  %126 = vmatmul.mubr.f32.gmra.mxu0 %v38
  %v127 = vpop.f32.mrf.mxu0
  %v128 = vadd.f32 0.0, %v127
  %v129 = vpop.f32.mrf.mxu0
  %130 = vdwg.mxu0
  %131 = vmatprep.subr.mxu0 0.0
  %132 = vmatpush1.msra.mxu0 %v36
  %133 = vmatprep.subr.mxu0 0.0
  %134 = vmatpush1.msra.mxu0 %v35
  %135 = vmatprep.subr.mxu0 0.0
  %136 = vmatpush1.msra.mxu0 %v34
  %137 = vmatprep.subr.mxu0 0.0
  %138 = vmatpush1.msra.mxu0 %v33
  %139 = vmatprep.subr.mxu0 0.0
  %140 = vmatpush1.msra.mxu0 %v32
  %141 = vmatprep.subr.mxu0 0.0
  %142 = vmatpush1.msra.mxu0 %v31
  %143 = vmatprep.subr.mxu0 0.0
  %144 = vmatpush1.msra.mxu0 %v30
  %145 = vmatprep.subr.mxu0 0.0
  %146 = vmatpush1.msra.mxu0 %v29
  %147 = vmatprep.subr.mxu0 0.0
  %148 = vmatpush1.msra.mxu0 %v28
  %149 = vmatprep.subr.mxu0 0.0
  %150 = vmatpush1.msra.mxu0 %v27
  %151 = vmatprep.subr.mxu0 0.0
  %152 = vmatpush1.msra.mxu0 %v26
  %153 = vmatprep.subr.mxu0 0.0
  %154 = vmatpush1.msra.mxu0 %v25
  %155 = vmatprep.subr.mxu0 0.0
  %156 = vmatpush1.msra.mxu0 %v24
  %157 = vmatprep.subr.mxu0 0.0
  %158 = vmatpush1.msra.mxu0 %v23
  %159 = vmatprep.subr.mxu0 0.0
  %160 = vmatpush1.msra.mxu0 %v22
  %161 = vmatprep.subr.mxu0 0.0
  %162 = vmatpush1.msra.mxu0 %v21
  %163 = vmatprep.subr.mxu0 0.0
  %164 = vmatpush2.msra.mxu0 0.0
  %165 = vmatprep.subr.mxu0 0.0
  %166 = vmatpush2.msra.mxu0 0.0
  %167 = vmatprep.subr.mxu0 0.0
  %168 = vmatpush2.msra.mxu0 0.0
  %169 = vmatprep.subr.mxu0 0.0
  %170 = vmatpush2.msra.mxu0 0.0
  %171 = vmatprep.subr.mxu0 0.0
  %172 = vmatpush2.msra.mxu0 0.0
  %173 = vmatprep.subr.mxu0 0.0
  %174 = vmatpush2.msra.mxu0 0.0
  %175 = vmatprep.subr.mxu0 0.0
  %176 = vmatpush2.msra.mxu0 0.0
  %177 = vmatprep.subr.mxu0 0.0
  %178 = vmatpush2.msra.mxu0 0.0
  %179 = vmatprep.subr.mxu0 0.0
  %180 = vmatpush2.msra.mxu0 0.0
  %181 = vmatprep.subr.mxu0 0.0
  %182 = vmatpush2.msra.mxu0 0.0
  %183 = vmatprep.subr.mxu0 0.0
  %184 = vmatpush2.msra.mxu0 0.0
  %185 = vmatprep.subr.mxu0 0.0
  %186 = vmatpush2.msra.mxu0 0.0
  %187 = vmatprep.subr.mxu0 0.0
  %188 = vmatpush2.msra.mxu0 0.0
  %189 = vmatprep.subr.mxu0 0.0
  %190 = vmatpush2.msra.mxu0 0.0
  %191 = vmatprep.subr.mxu0 0.0
  %192 = vmatpush2.msra.mxu0 0.0
  %193 = vmatprep.subr.mxu0 0.0
  %194 = vmatpush2.msra.mxu0 0.0
  %195 = vmatprep.mubr.f32.mxu0 0.0
  %196 = vmatmul.mubr.f32.gmra.mxu0 %v19
  %v197 = vpop.f32.mrf.mxu0
  %v198 = vadd.f32 %v123, %v197
  %v199 = vpop.f32.mrf.mxu0
  %200 = vmatprep.mubr.f32.mxu0 0.0
  %201 = vmatmul.mubr.f32.gmra.mxu0 %v20
  %v202 = vpop.f32.mrf.mxu0
  %v203 = vadd.f32 %v128, %v202
  %v204 = vpop.f32.mrf.mxu0
  %205 = vdwg.mxu0
  %v206 = vld [vmem:[%s0 + $0x2] sm:$0xff]
  %v207 = vld [vmem:[%s0 + $0xa] sm:$0xff]
  %s208 = scalar_lea.vmem %s1, 256
  %v209 = vld [vmem:[%s208] sm:$0xff]
  %v210 = vld [vmem:[%s208 + $0x8] sm:$0xff]
  %v211 = vld [vmem:[%s208 + $0x10] sm:$0xff]
  %v212 = vld [vmem:[%s208 + $0x18] sm:$0xff]
  %v213 = vld [vmem:[%s208 + $0x20] sm:$0xff]
  %v214 = vld [vmem:[%s208 + $0x28] sm:$0xff]
  %v215 = vld [vmem:[%s208 + $0x30] sm:$0xff]
  %v216 = vld [vmem:[%s208 + $0x38] sm:$0xff]
  %v217 = vld [vmem:[%s208 + $0x40] sm:$0xff]
  %v218 = vld [vmem:[%s208 + $0x48] sm:$0xff]
  %v219 = vld [vmem:[%s208 + $0x50] sm:$0xff]
  %v220 = vld [vmem:[%s208 + $0x58] sm:$0xff]
  %v221 = vld [vmem:[%s208 + $0x60] sm:$0xff]
  %v222 = vld [vmem:[%s208 + $0x68] sm:$0xff]
  %v223 = vld [vmem:[%s208 + $0x70] sm:$0xff]
  %v224 = vld [vmem:[%s208 + $0x78] sm:$0xff]
  %225 = vmatprep.subr.mxu0 0.0
  %226 = vmatpush1.msra.mxu0 %v224
  %227 = vmatprep.subr.mxu0 0.0
  %228 = vmatpush1.msra.mxu0 %v223
  %229 = vmatprep.subr.mxu0 0.0
  %230 = vmatpush1.msra.mxu0 %v222
  %231 = vmatprep.subr.mxu0 0.0
  %232 = vmatpush1.msra.mxu0 %v221
  %233 = vmatprep.subr.mxu0 0.0
  %234 = vmatpush1.msra.mxu0 %v220
  %235 = vmatprep.subr.mxu0 0.0
  %236 = vmatpush1.msra.mxu0 %v219
  %237 = vmatprep.subr.mxu0 0.0
  %238 = vmatpush1.msra.mxu0 %v218
  %239 = vmatprep.subr.mxu0 0.0
  %240 = vmatpush1.msra.mxu0 %v217
  %241 = vmatprep.subr.mxu0 0.0
  %242 = vmatpush1.msra.mxu0 %v216
  %243 = vmatprep.subr.mxu0 0.0
  %244 = vmatpush1.msra.mxu0 %v215
  %245 = vmatprep.subr.mxu0 0.0
  %246 = vmatpush1.msra.mxu0 %v214
  %247 = vmatprep.subr.mxu0 0.0
  %248 = vmatpush1.msra.mxu0 %v213
  %249 = vmatprep.subr.mxu0 0.0
  %250 = vmatpush1.msra.mxu0 %v212
  %251 = vmatprep.subr.mxu0 0.0
  %252 = vmatpush1.msra.mxu0 %v211
  %253 = vmatprep.subr.mxu0 0.0
  %254 = vmatpush1.msra.mxu0 %v210
  %255 = vmatprep.subr.mxu0 0.0
  %256 = vmatpush1.msra.mxu0 %v209
  %257 = vmatprep.subr.mxu0 0.0
  %258 = vmatpush2.msra.mxu0 0.0
  %259 = vmatprep.subr.mxu0 0.0
  %260 = vmatpush2.msra.mxu0 0.0
  %261 = vmatprep.subr.mxu0 0.0
  %262 = vmatpush2.msra.mxu0 0.0
  %263 = vmatprep.subr.mxu0 0.0
  %264 = vmatpush2.msra.mxu0 0.0
  %265 = vmatprep.subr.mxu0 0.0
  %266 = vmatpush2.msra.mxu0 0.0
  %267 = vmatprep.subr.mxu0 0.0
  %268 = vmatpush2.msra.mxu0 0.0
  %269 = vmatprep.subr.mxu0 0.0
  %270 = vmatpush2.msra.mxu0 0.0
  %271 = vmatprep.subr.mxu0 0.0
  %272 = vmatpush2.msra.mxu0 0.0
  %273 = vmatprep.subr.mxu0 0.0
  %274 = vmatpush2.msra.mxu0 0.0
  %275 = vmatprep.subr.mxu0 0.0
  %276 = vmatpush2.msra.mxu0 0.0
  %277 = vmatprep.subr.mxu0 0.0
  %278 = vmatpush2.msra.mxu0 0.0
  %279 = vmatprep.subr.mxu0 0.0
  %280 = vmatpush2.msra.mxu0 0.0
  %281 = vmatprep.subr.mxu0 0.0
  %282 = vmatpush2.msra.mxu0 0.0
  %283 = vmatprep.subr.mxu0 0.0
  %284 = vmatpush2.msra.mxu0 0.0
  %285 = vmatprep.subr.mxu0 0.0
  %286 = vmatpush2.msra.mxu0 0.0
  %287 = vmatprep.subr.mxu0 0.0
  %288 = vmatpush2.msra.mxu0 0.0
  %289 = vmatprep.mubr.f32.mxu0 0.0
  %290 = vmatmul.mubr.f32.gmra.mxu0 %v206
  %v291 = vpop.f32.mrf.mxu0
  %v292 = vadd.f32 0.0, %v291
  %v293 = vpop.f32.mrf.mxu0
  %294 = vmatprep.mubr.f32.mxu0 0.0
  %295 = vmatmul.mubr.f32.gmra.mxu0 %v207
  %v296 = vpop.f32.mrf.mxu0
  %v297 = vadd.f32 0.0, %v296
  %v298 = vpop.f32.mrf.mxu0
  %299 = vdwg.mxu0
  %v300 = vadd.f32 %v198, %v292
  %v301 = vadd.f32 %v203, %v297
  %v302 = vlaneseq
  %v303 = vshrl.u32 %v302, 7
  %v304 = vsub.s32 0, %v303
  %v305 = vrot.slane %v18, %v304
  %v306 = vmul.f32 %v300, %v305
  %v307 = vmul.f32 %v301, %v305
  %v308 = vlaneseq
  %v309 = vshrl.u32 %v308, 7
  %v310 = vsub.s32 1, %v309
  %v311 = vrot.slane %v18, %v310
  %v312 = vadd.f32 %v306, %v311
  %v313 = vadd.f32 %v307, %v311
  %v314 = vmax.f32 %v312, 0.0
  %v315 = vmax.f32 %v313, 0.0
  %v316 = vround.ne.pseudo %v314
  %v317 = vround.ne.pseudo %v315
  %v318 = vmax.f32 %v316, -8.0
  %v319 = vmax.f32 %v317, -8.0
  %v320 = vmin.f32 %v318, 7.0
  %v321 = vmin.f32 %v319, 7.0
  %322 = vst [vmem:[#allocation2] sm:$0xff] 0.0
  %323 = vst [vmem:[#allocation2 + $0x18] sm:$0xff] 0.0
  %324 = vst [vmem:[#allocation2 + $0x8] sm:$0xff] %v320
  %325 = vst [vmem:[#allocation2 + $0x10] sm:$0xff] %v321
  %v326 = vld [vmem:[#allocation2 + $0x7] sm:$0xff]
  %v327 = vld [vmem:[#allocation2 + $0xf] sm:$0xff]
  %v328 = vpack.c.bf16 %v327, %v326
  %v329 = vld [vmem:[%s2] sm:$0xf]
  %v330 = vld [vmem:[%s2 + $0x4] sm:$0xf]
  %v331 = vld [vmem:[%s2 + $0x8] sm:$0xf]
  %v332 = vld [vmem:[%s2 + $0xc] sm:$0xf]
  %v333 = vld [vmem:[%s2 + $0x10] sm:$0xf]
  %v334 = vld [vmem:[%s2 + $0x14] sm:$0xf]
  %v335 = vld [vmem:[%s2 + $0x18] sm:$0xf]
  %v336 = vld [vmem:[%s2 + $0x1c] sm:$0xf]
  %v337 = vld [vmem:[%s2 + $0x20] sm:$0xf]
  %v338 = vld [vmem:[%s2 + $0x24] sm:$0xf]
  %v339 = vld [vmem:[%s2 + $0x28] sm:$0xf]
  %v340 = vld [vmem:[%s2 + $0x2c] sm:$0xf]
  %v341 = vld [vmem:[%s2 + $0x30] sm:$0xf]
  %v342 = vld [vmem:[%s2 + $0x34] sm:$0xf]
  %v343 = vld [vmem:[%s2 + $0x38] sm:$0xf]
  %v344 = vld [vmem:[%s2 + $0x3c] sm:$0xf]
  %v345 = vld [vmem:[#allocation2 + $0x8] sm:$0xff]
  %v346 = vld [vmem:[#allocation2 + $0x10] sm:$0xff]
  %v347 = vpack.c.bf16 %v346, %v345
  %s348 = scalar_lea.vmem %s2, 64
  %v349 = vld [vmem:[%s348] sm:$0xf]
  %v350 = vld [vmem:[%s348 + $0x4] sm:$0xf]
  %v351 = vld [vmem:[%s348 + $0x8] sm:$0xf]
  %v352 = vld [vmem:[%s348 + $0xc] sm:$0xf]
  %v353 = vld [vmem:[%s348 + $0x10] sm:$0xf]
  %v354 = vld [vmem:[%s348 + $0x14] sm:$0xf]
  %v355 = vld [vmem:[%s348 + $0x18] sm:$0xf]
  %v356 = vld [vmem:[%s348 + $0x1c] sm:$0xf]
  %v357 = vld [vmem:[%s348 + $0x20] sm:$0xf]
  %v358 = vld [vmem:[%s348 + $0x24] sm:$0xf]
  %v359 = vld [vmem:[%s348 + $0x28] sm:$0xf]
  %v360 = vld [vmem:[%s348 + $0x2c] sm:$0xf]
  %v361 = vld [vmem:[%s348 + $0x30] sm:$0xf]
  %v362 = vld [vmem:[%s348 + $0x34] sm:$0xf]
  %v363 = vld [vmem:[%s348 + $0x38] sm:$0xf]
  %v364 = vld [vmem:[%s348 + $0x3c] sm:$0xf]
  %v381 = vunpack.c.l.b16 %v349
  %v382 = vunpack.c.l.b16 %v350
  %v383 = vunpack.c.l.b16 %v351
  %v384 = vunpack.c.l.b16 %v352
  %v385 = vunpack.c.l.b16 %v353
  %v386 = vunpack.c.l.b16 %v354
  %v387 = vunpack.c.l.b16 %v355
  %v388 = vunpack.c.l.b16 %v356
  %v389 = vunpack.c.l.b16 %v357
  %v390 = vunpack.c.l.b16 %v358
  %v391 = vunpack.c.l.b16 %v359
  %v392 = vunpack.c.l.b16 %v360
  %v393 = vunpack.c.l.b16 %v361
  %v394 = vunpack.c.l.b16 %v362
  %v395 = vunpack.c.l.b16 %v363
  %v396 = vunpack.c.l.b16 %v364
  %v397 = vpack.c.b16 %v382, %v381
  %v398 = vpack.c.b16 %v384, %v383
  %v399 = vpack.c.b16 %v386, %v385
  %v400 = vpack.c.b16 %v388, %v387
  %v401 = vpack.c.b16 %v390, %v389
  %v402 = vpack.c.b16 %v392, %v391
  %v403 = vpack.c.b16 %v394, %v393
  %v404 = vpack.c.b16 %v396, %v395
  %413 = vmatprep.subr.bf16.mxu0 0
  %414 = vmatpush1.bf16.msra.mxu0 %v404
  %415 = vmatprep.subr.bf16.mxu0 0
  %416 = vmatpush1.bf16.msra.mxu0 %v403
  %417 = vmatprep.subr.bf16.mxu0 0
  %418 = vmatpush1.bf16.msra.mxu0 %v402
  %419 = vmatprep.subr.bf16.mxu0 0
  %420 = vmatpush1.bf16.msra.mxu0 %v401
  %421 = vmatprep.subr.bf16.mxu0 0
  %422 = vmatpush1.bf16.msra.mxu0 %v400
  %423 = vmatprep.subr.bf16.mxu0 0
  %424 = vmatpush1.bf16.msra.mxu0 %v399
  %425 = vmatprep.subr.bf16.mxu0 0
  %426 = vmatpush1.bf16.msra.mxu0 %v398
  %427 = vmatprep.subr.bf16.mxu0 0
  %428 = vmatpush1.bf16.msra.mxu0 %v397
  %429 = vmatprep.subr.bf16.mxu0 0
  %430 = vmatpush2.bf16.msra.mxu0 0
  %431 = vmatprep.subr.bf16.mxu0 0
  %432 = vmatpush2.bf16.msra.mxu0 0
  %433 = vmatprep.subr.bf16.mxu0 0
  %434 = vmatpush2.bf16.msra.mxu0 0
  %435 = vmatprep.subr.bf16.mxu0 0
  %436 = vmatpush2.bf16.msra.mxu0 0
  %437 = vmatprep.subr.bf16.mxu0 0
  %438 = vmatpush2.bf16.msra.mxu0 0
  %439 = vmatprep.subr.bf16.mxu0 0
  %440 = vmatpush2.bf16.msra.mxu0 0
  %441 = vmatprep.subr.bf16.mxu0 0
  %442 = vmatpush2.bf16.msra.mxu0 0
  %443 = vmatprep.subr.bf16.mxu0 0
  %444 = vmatpush2.bf16.msra.mxu0 0
  %445 = vmatprep.mubr.bf16.mxu0 0
  %446 = vmatmul.mubr.bf16.gmra.mxu0 %v347
  %v447 = vpop.f32.mrf.mxu0
  %v448 = vadd.f32 0.0, %v447
  %v449 = vpop.f32.mrf.mxu0
  %v450 = vpop.f32.mrf.mxu0
  %v451 = vadd.f32 0.0, %v450
  %v452 = vpop.f32.mrf.mxu0
  %453 = vdwg.mxu0
  %v470 = vunpack.c.l.b16 %v329
  %v471 = vunpack.c.l.b16 %v330
  %v472 = vunpack.c.l.b16 %v331
  %v473 = vunpack.c.l.b16 %v332
  %v474 = vunpack.c.l.b16 %v333
  %v475 = vunpack.c.l.b16 %v334
  %v476 = vunpack.c.l.b16 %v335
  %v477 = vunpack.c.l.b16 %v336
  %v478 = vunpack.c.l.b16 %v337
  %v479 = vunpack.c.l.b16 %v338
  %v480 = vunpack.c.l.b16 %v339
  %v481 = vunpack.c.l.b16 %v340
  %v482 = vunpack.c.l.b16 %v341
  %v483 = vunpack.c.l.b16 %v342
  %v484 = vunpack.c.l.b16 %v343
  %v485 = vunpack.c.l.b16 %v344
  %v486 = vpack.c.b16 %v471, %v470
  %v487 = vpack.c.b16 %v473, %v472
  %v488 = vpack.c.b16 %v475, %v474
  %v489 = vpack.c.b16 %v477, %v476
  %v490 = vpack.c.b16 %v479, %v478
  %v491 = vpack.c.b16 %v481, %v480
  %v492 = vpack.c.b16 %v483, %v482
  %v493 = vpack.c.b16 %v485, %v484
  %502 = vmatprep.subr.bf16.mxu0 0
  %503 = vmatpush1.bf16.msra.mxu0 %v493
  %504 = vmatprep.subr.bf16.mxu0 0
  %505 = vmatpush1.bf16.msra.mxu0 %v492
  %506 = vmatprep.subr.bf16.mxu0 0
  %507 = vmatpush1.bf16.msra.mxu0 %v491
  %508 = vmatprep.subr.bf16.mxu0 0
  %509 = vmatpush1.bf16.msra.mxu0 %v490
  %510 = vmatprep.subr.bf16.mxu0 0
  %511 = vmatpush1.bf16.msra.mxu0 %v489
  %512 = vmatprep.subr.bf16.mxu0 0
  %513 = vmatpush1.bf16.msra.mxu0 %v488
  %514 = vmatprep.subr.bf16.mxu0 0
  %515 = vmatpush1.bf16.msra.mxu0 %v487
  %516 = vmatprep.subr.bf16.mxu0 0
  %517 = vmatpush1.bf16.msra.mxu0 %v486
  %518 = vmatprep.subr.bf16.mxu0 0
  %519 = vmatpush2.bf16.msra.mxu0 0
  %520 = vmatprep.subr.bf16.mxu0 0
  %521 = vmatpush2.bf16.msra.mxu0 0
  %522 = vmatprep.subr.bf16.mxu0 0
  %523 = vmatpush2.bf16.msra.mxu0 0
  %524 = vmatprep.subr.bf16.mxu0 0
  %525 = vmatpush2.bf16.msra.mxu0 0
  %526 = vmatprep.subr.bf16.mxu0 0
  %527 = vmatpush2.bf16.msra.mxu0 0
  %528 = vmatprep.subr.bf16.mxu0 0
  %529 = vmatpush2.bf16.msra.mxu0 0
  %530 = vmatprep.subr.bf16.mxu0 0
  %531 = vmatpush2.bf16.msra.mxu0 0
  %532 = vmatprep.subr.bf16.mxu0 0
  %533 = vmatpush2.bf16.msra.mxu0 0
  %534 = vmatprep.mubr.bf16.mxu0 0
  %535 = vmatmul.mubr.bf16.gmra.mxu0 %v328
  %v536 = vpop.f32.mrf.mxu0
  %v537 = vadd.f32 %v448, %v536
  %v538 = vpop.f32.mrf.mxu0
  %v539 = vpop.f32.mrf.mxu0
  %v540 = vadd.f32 %v451, %v539
  %v541 = vpop.f32.mrf.mxu0
  %542 = vdwg.mxu0
  %v543 = vld [vmem:[#allocation2 + $0x9] sm:$0xff]
  %v544 = vld [vmem:[#allocation2 + $0x11] sm:$0xff]
  %v545 = vpack.c.bf16 %v544, %v543
  %s546 = scalar_lea.vmem %s2, 128
  %v547 = vld [vmem:[%s546] sm:$0xf]
  %v548 = vld [vmem:[%s546 + $0x4] sm:$0xf]
  %v549 = vld [vmem:[%s546 + $0x8] sm:$0xf]
  %v550 = vld [vmem:[%s546 + $0xc] sm:$0xf]
  %v551 = vld [vmem:[%s546 + $0x10] sm:$0xf]
  %v552 = vld [vmem:[%s546 + $0x14] sm:$0xf]
  %v553 = vld [vmem:[%s546 + $0x18] sm:$0xf]
  %v554 = vld [vmem:[%s546 + $0x1c] sm:$0xf]
  %v555 = vld [vmem:[%s546 + $0x20] sm:$0xf]
  %v556 = vld [vmem:[%s546 + $0x24] sm:$0xf]
  %v557 = vld [vmem:[%s546 + $0x28] sm:$0xf]
  %v558 = vld [vmem:[%s546 + $0x2c] sm:$0xf]
  %v559 = vld [vmem:[%s546 + $0x30] sm:$0xf]
  %v560 = vld [vmem:[%s546 + $0x34] sm:$0xf]
  %v561 = vld [vmem:[%s546 + $0x38] sm:$0xf]
  %v562 = vld [vmem:[%s546 + $0x3c] sm:$0xf]
  %v579 = vunpack.c.l.b16 %v547
  %v580 = vunpack.c.l.b16 %v548
  %v581 = vunpack.c.l.b16 %v549
  %v582 = vunpack.c.l.b16 %v550
  %v583 = vunpack.c.l.b16 %v551
  %v584 = vunpack.c.l.b16 %v552
  %v585 = vunpack.c.l.b16 %v553
  %v586 = vunpack.c.l.b16 %v554
  %v587 = vunpack.c.l.b16 %v555
  %v588 = vunpack.c.l.b16 %v556
  %v589 = vunpack.c.l.b16 %v557
  %v590 = vunpack.c.l.b16 %v558
  %v591 = vunpack.c.l.b16 %v559
  %v592 = vunpack.c.l.b16 %v560
  %v593 = vunpack.c.l.b16 %v561
  %v594 = vunpack.c.l.b16 %v562
  %v595 = vpack.c.b16 %v580, %v579
  %v596 = vpack.c.b16 %v582, %v581
  %v597 = vpack.c.b16 %v584, %v583
  %v598 = vpack.c.b16 %v586, %v585
  %v599 = vpack.c.b16 %v588, %v587
  %v600 = vpack.c.b16 %v590, %v589
  %v601 = vpack.c.b16 %v592, %v591
  %v602 = vpack.c.b16 %v594, %v593
  %611 = vmatprep.subr.bf16.mxu0 0
  %612 = vmatpush1.bf16.msra.mxu0 %v602
  %613 = vmatprep.subr.bf16.mxu0 0
  %614 = vmatpush1.bf16.msra.mxu0 %v601
  %615 = vmatprep.subr.bf16.mxu0 0
  %616 = vmatpush1.bf16.msra.mxu0 %v600
  %617 = vmatprep.subr.bf16.mxu0 0
  %618 = vmatpush1.bf16.msra.mxu0 %v599
  %619 = vmatprep.subr.bf16.mxu0 0
  %620 = vmatpush1.bf16.msra.mxu0 %v598
  %621 = vmatprep.subr.bf16.mxu0 0
  %622 = vmatpush1.bf16.msra.mxu0 %v597
  %623 = vmatprep.subr.bf16.mxu0 0
  %624 = vmatpush1.bf16.msra.mxu0 %v596
  %625 = vmatprep.subr.bf16.mxu0 0
  %626 = vmatpush1.bf16.msra.mxu0 %v595
  %627 = vmatprep.subr.bf16.mxu0 0
  %628 = vmatpush2.bf16.msra.mxu0 0
  %629 = vmatprep.subr.bf16.mxu0 0
  %630 = vmatpush2.bf16.msra.mxu0 0
  %631 = vmatprep.subr.bf16.mxu0 0
  %632 = vmatpush2.bf16.msra.mxu0 0
  %633 = vmatprep.subr.bf16.mxu0 0
  %634 = vmatpush2.bf16.msra.mxu0 0
  %635 = vmatprep.subr.bf16.mxu0 0
  %636 = vmatpush2.bf16.msra.mxu0 0
  %637 = vmatprep.subr.bf16.mxu0 0
  %638 = vmatpush2.bf16.msra.mxu0 0
  %639 = vmatprep.subr.bf16.mxu0 0
  %640 = vmatpush2.bf16.msra.mxu0 0
  %641 = vmatprep.subr.bf16.mxu0 0
  %642 = vmatpush2.bf16.msra.mxu0 0
  %643 = vmatprep.mubr.bf16.mxu0 0
  %644 = vmatmul.mubr.bf16.gmra.mxu0 %v545
  %v645 = vpop.f32.mrf.mxu0
  %v646 = vadd.f32 0.0, %v645
  %v647 = vpop.f32.mrf.mxu0
  %v648 = vpop.f32.mrf.mxu0
  %v649 = vadd.f32 0.0, %v648
  %v650 = vpop.f32.mrf.mxu0
  %651 = vdwg.mxu0
  %v652 = vadd.f32 %v537, %v646
  %v653 = vadd.f32 %v540, %v649
  %v654 = vlaneseq
  %v655 = vshrl.u32 %v654, 7
  %v656 = vsub.s32 2, %v655
  %v657 = vrot.slane %v18, %v656
  %v658 = vmul.f32 %v652, %v657
  %v659 = vmul.f32 %v653, %v657
  %v660 = vlaneseq
  %v661 = vshrl.u32 %v660, 7
  %v662 = vsub.s32 3, %v661
  %v663 = vrot.slane %v18, %v662
  %v664 = vadd.f32 %v658, %v663
  %v665 = vadd.f32 %v659, %v663
  %v666 = vround.ne.pseudo %v664
  %v667 = vround.ne.pseudo %v665
  %v668 = vmax.f32 %v666, -8.0
  %v669 = vmax.f32 %v667, -8.0
  %v670 = vmin.f32 %v668, 7.0
  %v671 = vmin.f32 %v669, 7.0
  %v672 = vlaneseq
  %v673 = vshrl.u32 %v672, 7
  %v674 = vsub.s32 4, %v673
  %v675 = vrot.slane %v18, %v674
  %v676 = vmul.f32 %v670, %v675
  %v677 = vmul.f32 %v671, %v675
  %v678 = vld [vmem:[%s0 + $0x1] sm:$0xff]
  %v679 = vld [vmem:[%s0 + $0x9] sm:$0xff]
  %v680 = vadd.f32 %v676, %v678
  %v681 = vadd.f32 %v677, %v679
  %v682 = vmax.f32 %v680, 0.0
  %v683 = vmax.f32 %v681, 0.0
  %v684 = vlaneseq
  %v685 = vshrl.u32 %v684, 7
  %v686 = vsub.s32 5, %v685
  %v687 = vrot.slane %v18, %v686
  %v688 = vmul.f32 %v682, %v687
  %v689 = vmul.f32 %v683, %v687
  %v690 = vround.ne.pseudo %v688
  %v691 = vround.ne.pseudo %v689
  %v692 = vmax.f32 %v690, -8.0
  %v693 = vmax.f32 %v691, -8.0
  %v694 = vmin.f32 %v692, 7.0
  %v695 = vmin.f32 %v693, 7.0
  %v696 = vpack.c.bf16 %v695, %v694
  %v698 = vunpack.c.l.b16 %v696
  %v699 = vunpack.c.h.b16 %v696
  %v700 = vpack.c.b16 %v698, %v698
  %v701 = vpack.c.b16 %v699, %v699
  %704 = vst [vmem:[%s4] sm:$0xf] %v700
  %705 = vst [vmem:[%s4 + $0x4] sm:$0xf] %v701
  // Predicated region
  $region18: #{_lambda_.1} parent=0 // pred_check
    _
  $region19: #{_lambda_.1} parent=0 // pred_check_branch
    %707 = sbr.rel (0) target = $region21
  $region20: #{_lambda_.1} parent=0 // pred_region
    _
  $region21: #{_lambda_.1} parent=0 // pred_fallthru
    _
  // Predicated region
  $region22: #{_lambda_.1} parent=0 // pred_check
    _
  $region23: #{_lambda_.1} parent=0 // pred_check_branch
    %709 = sbr.rel (0) target = $region25
  $region24: #{_lambda_.1} parent=0 // pred_region
    _
  $region25: #{_lambda_.1} parent=0 // pred_fallthru
    _

</llo_original>
